<compile_context>
chip_gen: v7x
topology: tpu7x:2x2x1
jax: 0.10.0
libtpu: 0.0.40
codegen_flags: <defaults>
</compile_context>

<pallas_src>
import jax
import jax.numpy as jnp
from jax.experimental import pallas as pl
from jax.experimental.pallas import tpu as pltpu


# --------------------------------------------------------------------------
# Small helpers
# --------------------------------------------------------------------------
def _round_up(x, m):
    return (x + m - 1) // m * m


def _sublane_multiple(dtype):
    # Native (sublane, 128) tile: f32 -> (8,128), bf16 -> (16,128), int8 -> (32,128)
    return {4: 8, 2: 16, 1: 32}.get(jnp.dtype(dtype).itemsize, 8)


def _largest_aligned_divisor(n, cap, align=128):
    """Largest multiple of `align` dividing `n` (n % align == 0) and <= cap."""
    best = align
    d = align
    top = min(n, cap)
    while d <= top:
        if n % d == 0:
            best = d
        d += align
    return best


def _choose_tm(batch, sub, max_block_m):
    """Pick an M tile: multiple of `sub`, <= max_block_m, minimizing padding."""
    b_aligned = _round_up(batch, sub)
    if b_aligned <= max_block_m:
        return b_aligned                      # single M block, minimal pad
    cap = max_block_m - (max_block_m % sub)
    best_tm, best_pad = sub, None
    for tm in range(cap, sub - 1, -sub):      # descending -> ties keep larger tm
        pad = _round_up(batch, tm) - batch
        if best_pad is None or pad < best_pad:
            best_tm, best_pad = tm, pad
            if pad == 0:
                break
    return best_tm


def _default_vmem_limit_bytes():
    """Per-generation VMEM budget with headroom (48 MiB v7x, 96 MiB v5e/v6e)."""
    cap = None
    try:
        info = pltpu.get_tpu_info()
        cap = getattr(info, "vmem_capacity_bytes", None)
    except Exception:
        cap = None
    if not cap:
        cap = 64 * 1024 * 1024                # conservative (v7x physical / TC)
    return int(min(cap * 3 // 4, 96 * 1024 * 1024))


# --------------------------------------------------------------------------
# Kernel: one (tm, tn) output tile; K is the trailing "arbitrary" grid axis.
# --------------------------------------------------------------------------
def _swiglu_linear_kernel(x_ref, w_ref, b_ref, o_ref, acc_ref):
    k = pl.program_id(2)

    @pl.when(k == 0)
    def _init():
        acc_ref[...] = jnp.zeros_like(acc_ref)

    # Single fused MXU matmul against the packed [a_j | b_j] weight tile,
    # accumulated in f32.
    acc_ref[...] += jnp.dot(
        x_ref[...], w_ref[...], preferred_element_type=jnp.float32
    )

    @pl.when(k == pl.num_programs(2) - 1)
    def _finalize():
        tn = o_ref.shape[-1]
        acc = acc_ref[...] + b_ref[...].astype(jnp.float32)
        a = acc[:, :tn]                       # tn is a 128-multiple -> lane-aligned
        g = acc[:, tn:]
        o_ref[...] = (a * jax.nn.sigmoid(g)).astype(o_ref.dtype)


# --------------------------------------------------------------------------
# One-time parameter layout (do at module init, NOT per forward call).
# --------------------------------------------------------------------------
def prepare_swiglu_params(weight, bias, *, compute_dtype=None,
                          max_block_n=256, prefer_two_n_blocks=True):
    """weight: (2N, K) in PyTorch nn.Linear layout; bias: (2N,).

    Returns a packed (N_pad//tn, K_pad, 2*tn) weight slab (each j-block's K x
    [a_j | b_j] tile fully contiguous), a block-interleaved bias, and tn.
    """
    twoN, K = weight.shape
    assert twoN % 2 == 0 and bias.shape == (twoN,)
    N = twoN // 2

    # N tile: largest 128-multiple dividing round_up(N,128) -> zero N waste.
    N_pad = _round_up(N, 128)
    tn = _largest_aligned_divisor(N_pad, max_block_n)
    # Keep >=2 parallel j-blocks when possible (v7x has 2 TensorCores).
    if prefer_two_n_blocks and N_pad // tn < 2 and N_pad >= 256:
        tn = _largest_aligned_divisor(N_pad, N_pad // 2)
    nblk = N_pad // tn

    # K padded only to the 128 lane boundary; tk is chosen at call time as a
    # divisor of K_pad, so the weight layout is tk-agnostic.
    K_pad = _round_up(K, 128)

    w_t = weight.T                                        # (K, 2N)
    wa = jnp.pad(w_t[:, :N], ((0, K_pad - K), (0, N_pad - N)))
    wb = jnp.pad(w_t[:, N:], ((0, K_pad - K), (0, N_pad - N)))

    # (nblk, K_pad, 2*tn): block j = [a_j | b_j], contiguous per tile.
    w_packed = jnp.concatenate(
        [wa.reshape(K_pad, nblk, tn), wb.reshape(K_pad, nblk, tn)], axis=-1
    ).transpose(1, 0, 2)                                  # (nblk, K_pad, 2*tn)

    ba = jnp.pad(bias[:N], (0, N_pad - N)).astype(jnp.float32)
    bb = jnp.pad(bias[N:], (0, N_pad - N)).astype(jnp.float32)
    b_packed = jnp.concatenate(
        [ba.reshape(nblk, tn), bb.reshape(nblk, tn)], axis=-1
    ).reshape(1, 2 * N_pad)

    if compute_dtype is not None:
        w_packed = w_packed.astype(compute_dtype)         # e.g. bf16 MXU inputs

    return dict(w=w_packed, b=b_packed, n=N, k=K, tn=tn,
                n_pad=N_pad, k_pad=K_pad)


# --------------------------------------------------------------------------
# Forward: x (..., K) -> (..., N) = a * sigmoid(b), [a, b] = x @ W^T + bias.
# --------------------------------------------------------------------------
def swiglu_linear(x, params, *, max_block_m=512, max_block_k=1024,
                  vmem_limit_bytes=None, weight_buffer_count=None):
    w, b = params["w"], params["b"]
    N, K = params["n"], params["k"]
    tn, N_pad, K_pad = params["tn"], params["n_pad"], params["k_pad"]

    lead_shape = x.shape[:-1]
    assert x.shape[-1] == K, "in_features mismatch"
    x = x.reshape(-1, K)
    B = x.shape[0]

    out_dtype = x.dtype
    if x.dtype != w.dtype:
        x = x.astype(w.dtype)       # only when a compute_dtype was requested

    if vmem_limit_bytes is None:
        vmem_limit_bytes = _default_vmem_limit_bytes()

    # M tile: sublane multiple of BOTH the compute dtype and the output dtype.
    sub = max(_sublane_multiple(x.dtype), _sublane_multiple(out_dtype), 8)
    tm = _choose_tm(B, sub, max_block_m)
    B_pad = _round_up(B, tm)

    # K tile: largest 128-multiple divisor of K_pad that fits the VMEM budget.
    x_isz = jnp.dtype(x.dtype).itemsize
    w_isz = jnp.dtype(w.dtype).itemsize
    o_isz = jnp.dtype(out_dtype).itemsize
    w_bufs = weight_buffer_count if weight_buffer_count else 2
    budget = int(vmem_limit_bytes * 0.8)

    def _working_set(tk):
        return (2 * tm * tk * x_isz              # x double buffer
                + w_bufs * tk * 2 * tn * w_isz   # weight buffers
                + 2 * 2 * tn * 4                 # bias (f32)
                + 2 * tm * tn * o_isz            # output double buffer
                + tm * 2 * tn * 4)               # f32 accumulator scratch

    tk = _largest_aligned_divisor(K_pad, max_block_k)
    while tk > 128 and _working_set(tk) > budget:
        tk = _largest_aligned_divisor(K_pad, tk - 128)

    if (B_pad, K_pad) != (B, K):
        x = jnp.pad(x, ((0, B_pad - B), (0, K_pad - K)))  # explicit tail padding

    grid = (B_pad // tm, N_pad // tn, K_pad // tk)

    w_spec_kwargs = {}
    if weight_buffer_count:
        w_spec_kwargs["pipeline_mode"] = pl.Buffered(weight_buffer_count)

    cost = pl.CostEstimate(
        flops=int(2 * B_pad * K_pad * 2 * N_pad),
        transcendentals=int(B_pad * N_pad),
        bytes_accessed=int(x.size * x_isz + w.size * w_isz
                           + b.size * b.dtype.itemsize + B_pad * N_pad * o_isz),
    )

    out = pl.pallas_call(
        _swiglu_linear_kernel,
        out_shape=jax.ShapeDtypeStruct((B_pad, N_pad), out_dtype),
        grid_spec=pltpu.PrefetchScalarGridSpec(
            num_scalar_prefetch=0,
            grid=grid,
            in_specs=[
                pl.BlockSpec((tm, tk), lambda i, j, k: (i, k)),          # x tile
                pl.BlockSpec((pl.Squeezed(), tk, 2 * tn),                # packed W
                             lambda i, j, k: (j, k, 0), **w_spec_kwargs),
                pl.BlockSpec((1, 2 * tn), lambda i, j, k: (0, j)),       # bias
            ],
            out_specs=pl.BlockSpec((tm, tn), lambda i, j, k: (i, j)),
            scratch_shapes=[pltpu.VMEM((tm, 2 * tn), jnp.float32)],      # f32 acc
        ),
        compiler_params=pltpu.CompilerParams(
            dimension_semantics=("parallel", "parallel", "arbitrary"),
            vmem_limit_bytes=int(vmem_limit_bytes),
        ),
        cost_estimate=cost,
    )(x, w, b)

    if (B_pad, N_pad) != (B, N):
        out = out[:B, :N]
    return out.reshape(*lead_shape, N)


if __name__ == "__main__":
    # Small shapes consistent with the module: batch=8, in_features=32,
    # out_features=128 (linear emits 256 features, SwiGLU halves to 128).
    B, IN_FEATURES, OUT_FEATURES = 8, 32, 128

    key = jax.random.PRNGKey(0)
    kx, kw, kb = jax.random.split(key, 3)

    bound = 1.0 / (IN_FEATURES ** 0.5)
    weight = jax.random.uniform(
        kw, (2 * OUT_FEATURES, IN_FEATURES), jnp.float32, -bound, bound)
    bias = jax.random.uniform(
        kb, (2 * OUT_FEATURES,), jnp.float32, -bound, bound)
    x = jax.random.normal(kx, (B, IN_FEATURES), jnp.float32)

    params = prepare_swiglu_params(weight, bias)     # one-time weight layout
    out = jax.block_until_ready(swiglu_linear(x, params))

    # Reference check (plain JAX) to verify exact forward semantics.
    lin = x @ weight.T + bias
    a_ref, b_ref = lin[:, :OUT_FEATURES], lin[:, OUT_FEATURES:]
    ref = a_ref * jax.nn.sigmoid(b_ref)
    assert out.shape == (B, OUT_FEATURES)
    assert jnp.allclose(out, ref, atol=1e-5, rtol=1e-5), \
        float(jnp.abs(out - ref).max())

    print("KERNEL_OK")
</pallas_src>

<mosaic_0001>
module attributes {stable_mosaic.version = 11 : i64} {
  func.func @_swiglu_linear_kernel(%arg0: i32, %arg1: i32, %arg2: i32, %arg3: memref<8x128xf32, #tpu.memory_space<vmem>>, %arg4: memref<1x128x256xf32, #tpu.memory_space<vmem>>, %arg5: memref<1x256xf32, #tpu.memory_space<vmem>>, %arg6: memref<8x128xf32, #tpu.memory_space<vmem>>, %arg7: memref<8x256xf32, #tpu.memory_space<vmem>>) attributes {dimension_semantics = [#tpu.dimension_semantics<parallel>, #tpu.dimension_semantics<parallel>, #tpu.dimension_semantics<arbitrary>], iteration_bounds = array<i64: 1, 1, 1>, scalar_prefetch = 0 : i64, scratch_operands = 1 : i64, tpu.core_type = #tpu.core_type<tc>, window_params = [{transform_indices = @transform_0, window_bounds = array<i64: 8, 128>}, {transform_indices = @transform_1, window_bounds = array<i64: 1, 128, 256>}, {transform_indices = @transform_2, window_bounds = array<i64: 1, 256>}, {transform_indices = @transform_3, window_bounds = array<i64: 8, 128>}]} {
    %c0_i32 = arith.constant 0 : i32
    %0 = arith.cmpi eq, %arg2, %c0_i32 : i32
    %1 = arith.extui %0 : i1 to i32
    %c0_i32_0 = arith.constant 0 : i32
    %2 = arith.cmpi ne, %1, %c0_i32_0 : i32
    scf.if %2 {
      %cst_11 = arith.constant 0.000000e+00 : f32
      %13 = vector.broadcast %cst_11 : f32 to vector<8x256xf32>
      %c0_12 = arith.constant 0 : index
      %c0_13 = arith.constant 0 : index
      %14 = vector.load %arg7[%c0_12, %c0_13] : memref<8x256xf32, #tpu.memory_space<vmem>>, vector<8x256xf32>
      tpu.vector_store %arg7[%c0_12, %c0_13], %13 {strides = array<i32>} : memref<8x256xf32, #tpu.memory_space<vmem>>, vector<8x256xf32>,
    } else {
    }
    %c0 = arith.constant 0 : index
    %c0_1 = arith.constant 0 : index
    %3 = vector.load %arg7[%c0, %c0_1] : memref<8x256xf32, #tpu.memory_space<vmem>>, vector<8x256xf32>
    %c0_2 = arith.constant 0 : index
    %c0_3 = arith.constant 0 : index
    %4 = vector.load %arg3[%c0_2, %c0_3] : memref<8x128xf32, #tpu.memory_space<vmem>>, vector<8x128xf32>
    %c0_4 = arith.constant 0 : index
    %c0_5 = arith.constant 0 : index
    %c0_6 = arith.constant 0 : index
    %5 = vector.load %arg4[%c0_4, %c0_5, %c0_6] : memref<1x128x256xf32, #tpu.memory_space<vmem>>, vector<1x128x256xf32>
    %6 = vector.shape_cast %5 : vector<1x128x256xf32> to vector<128x256xf32>
    %cst = arith.constant dense<0.000000e+00> : vector<8x256xf32>
    %7 = tpu.matmul %4, %6, %cst {dimension_numbers = #tpu.dot_dimension_numbers<[1], [0], [0], [1], [0, 0, 1, 1], [], []>} : vector<8x128xf32>, vector<128x256xf32>, vector<8x256xf32> -> vector<8x256xf32>
    %8 = arith.addf %3, %7 : vector<8x256xf32>
    %c0_7 = arith.constant 0 : index
    %c0_8 = arith.constant 0 : index
    %9 = vector.load %arg7[%c0_7, %c0_8] : memref<8x256xf32, #tpu.memory_space<vmem>>, vector<8x256xf32>
    tpu.vector_store %arg7[%c0_7, %c0_8], %8 {strides = array<i32>} : memref<8x256xf32, #tpu.memory_space<vmem>>, vector<8x256xf32>,
    %c0_i32_9 = arith.constant 0 : i32
    %10 = arith.cmpi eq, %arg2, %c0_i32_9 : i32
    %11 = arith.extui %10 : i1 to i32
    %c0_i32_10 = arith.constant 0 : i32
    %12 = arith.cmpi ne, %11, %c0_i32_10 : i32
    scf.if %12 {
      %c0_11 = arith.constant 0 : index
      %c0_12 = arith.constant 0 : index
      %13 = vector.load %arg7[%c0_11, %c0_12] : memref<8x256xf32, #tpu.memory_space<vmem>>, vector<8x256xf32>
      %c0_13 = arith.constant 0 : index
      %c0_14 = arith.constant 0 : index
      %14 = vector.load %arg5[%c0_13, %c0_14] : memref<1x256xf32, #tpu.memory_space<vmem>>, vector<1x256xf32>
      %15 = vector.broadcast %14 : vector<1x256xf32> to vector<8x256xf32>
      %16 = arith.addf %13, %15 : vector<8x256xf32>
      %17 = vector.extract_strided_slice %16 {offsets = [0, 0], sizes = [8, 128], strides = [1, 1]} : vector<8x256xf32> to vector<8x128xf32>
      %18 = vector.extract_strided_slice %16 {offsets = [0, 128], sizes = [8, 128], strides = [1, 1]} : vector<8x256xf32> to vector<8x128xf32>
      %19 = arith.negf %18 : vector<8x128xf32>
      %20 = math.exp %19 : vector<8x128xf32>
      %cst_15 = arith.constant 1.000000e+00 : f32
      %21 = vector.broadcast %cst_15 : f32 to vector<8x128xf32>
      %22 = arith.addf %21, %20 : vector<8x128xf32>
      %23 = arith.divf %21, %22 : vector<8x128xf32>
      %24 = arith.mulf %17, %23 : vector<8x128xf32>
      %c0_16 = arith.constant 0 : index
      %c0_17 = arith.constant 0 : index
      %25 = vector.load %arg6[%c0_16, %c0_17] : memref<8x128xf32, #tpu.memory_space<vmem>>, vector<8x128xf32>
      tpu.vector_store %arg6[%c0_16, %c0_17], %24 {strides = array<i32>} : memref<8x128xf32, #tpu.memory_space<vmem>>, vector<8x128xf32>,
    } else {
    }
    return
  }
  func.func @transform_0(%arg0: i32, %arg1: i32, %arg2: i32) -> (i32, i32) {
    %c0_i32 = arith.constant 0 : i32
    return %arg0, %arg2 : i32, i32
  }
  func.func @transform_1(%arg0: i32, %arg1: i32, %arg2: i32) -> (i32, i32, i32) {
    %c0_i32 = arith.constant 0 : i32
    %c0_i32_0 = arith.constant 0 : i32
    return %arg1, %arg2, %c0_i32 : i32, i32, i32
  }
  func.func @transform_2(%arg0: i32, %arg1: i32, %arg2: i32) -> (i32, i32) {
    %c0_i32 = arith.constant 0 : i32
    %c0_i32_0 = arith.constant 0 : i32
    return %c0_i32, %arg1 : i32, i32
  }
  func.func @transform_3(%arg0: i32, %arg1: i32, %arg2: i32) -> (i32, i32) {
    %c0_i32 = arith.constant 0 : i32
    return %arg0, %arg1 : i32, i32
  }
}

</mosaic_0001>

<llo_original>
// kernel: tpu_custom_call.1
$region0: #{tpu_custom_call.1}
  #allocation0 [shape = 'u32[]', space=smem, size = 0x4, offset = 0x4, fixed_abs, tag = 'smem constant byte address 0x4 - core index']
  #allocation1 [shape = 'u32[144,128]{1,0:T(1,128)}', space=vmem, size = 0x12000, scoped, tag = 'internal scratch']
  #allocation2 [shape = 'f32[8,256]{1,0:T(8,128)}', space=vmem, size = 0x2000, scoped, tag = 'scratch operand']
  %s0 = inlined_call_operand.hbm [shape: f32[8,128], index: 0, kind: input, shape index: {}]
  %s1 = inlined_call_operand.hbm [shape: f32[1,128,256], index: 1, kind: input, shape index: {}]
  %s2 = inlined_call_operand.vmem [shape: f32[1,256], index: 2, kind: input, shape index: {}]
  %s3 = inlined_call_operand.hbm [shape: f32[8,128], index: 3, kind: output, shape index: {}]
  %s4 = sld [smem:[#allocation0]]
  $region38: #{tpu_custom_call.1} parent=0
    _
  %s6 = ssub.s32 1, %s4
  %s7 = scalar_select 0, %s6, %s4
  $region1: #{tpu_custom_call.1} parent=0
    #allocation3 [shape = 'u8[4096]{0}', space=vmem, size = 0x1000, scoped, tag = 'input window, operand 0, single buffered']
    #allocation4 [shape = 's32[1]{0}', space=sflag, size = 0x4, scoped, tag = 'scoped memory for tpu_custom_call.1']
    #allocation5 [shape = 's32[1]{0}', space=sflag, size = 0x4, scoped, tag = 'scoped memory for tpu_custom_call.1']
    #allocation6 [shape = 'u8[131072]{0}', space=vmem, size = 0x20000, scoped, tag = 'input window, operand 1, single buffered']
    #allocation7 [shape = 's32[1]{0}', space=sflag, size = 0x4, scoped, tag = 'scoped memory for tpu_custom_call.1']
    #allocation8 [shape = 'u8[4096]{0}', space=vmem, size = 0x1000, scoped, tag = 'output window, operand 0, single buffered']
    %8 = vsyncpa [#allocation4], 0
    %9 = vsyncpa [#allocation7], 0
    %10 = vsyncpa [#allocation5], 0
    // Predicated region
    $region2: #{tpu_custom_call.1} parent=1 // pred_check
      _
    $region3: #{tpu_custom_call.1} parent=1 // pred_check_branch
      %12 = sbr.rel (0) target = $region5
    $region4: #{tpu_custom_call.1} parent=1 // pred_region
      %s14 = ssub.s32 128, 128
      %15 = vsyncadd [#allocation4], %s14
      %s17 = sshll.u32 [#allocation3], 4
      %s18 = int_to_ptr.vmem [resolvable:$true] %s17
      %20 = dma.hbm_to_vmem [thread:$0]  %s0, 128, %s18, [#allocation4]
    $region5: #{tpu_custom_call.1} parent=1 // pred_fallthru
      _
    // Predicated region
    $region6: #{tpu_custom_call.1} parent=1 // pred_check
      _
    $region7: #{tpu_custom_call.1} parent=1 // pred_check_branch
      %22 = sbr.rel (0) target = $region9
    $region8: #{tpu_custom_call.1} parent=1 // pred_region
      %s24 = ssub.s32 4096, 4096
      %25 = vsyncadd [#allocation7], %s24
      %s26 = sshll.u32 [#allocation6], 4
      %s27 = int_to_ptr.vmem [resolvable:$true] %s26
      %32 = dma.hbm_to_vmem [thread:$0]  %s1, 4096, %s27, [#allocation7], 256, 256, 16
    $region9: #{tpu_custom_call.1} parent=1 // pred_fallthru
      _
    // Predicated region
    $region10: #{tpu_custom_call.1} parent=1 // pred_check
      _
    $region11: #{tpu_custom_call.1} parent=1 // pred_check_branch
      %34 = sbr.rel (0) target = $region13
    $region12: #{tpu_custom_call.1} parent=1 // pred_region
      _
    $region13: #{tpu_custom_call.1} parent=1 // pred_fallthru
      _
    // Predicated region
    $region14: #{tpu_custom_call.1} parent=1 // pred_check
      _
    $region15: #{tpu_custom_call.1} parent=1 // pred_check_branch
      %36 = sbr.rel (0) target = $region17
    $region16: #{tpu_custom_call.1} parent=1 // pred_region
      %37 = dma.done [#allocation4], 128
    $region17: #{tpu_custom_call.1} parent=1 // pred_fallthru
      _
    // Predicated region
    $region18: #{tpu_custom_call.1} parent=1 // pred_check
      _
    $region19: #{tpu_custom_call.1} parent=1 // pred_check_branch
      %39 = sbr.rel (0) target = $region21
    $region20: #{tpu_custom_call.1} parent=1 // pred_region
      %40 = dma.done [#allocation7], 4096
    $region21: #{tpu_custom_call.1} parent=1 // pred_fallthru
      _
    %p41 = scmp.eq.s32.totalorder 0, 0
    // Predicated region
    $region22: #{tpu_custom_call.1} parent=1 // pred_check
      %p42 = pneg %p41
    $region23: #{tpu_custom_call.1} parent=1 // pred_check_branch
      %44 = sbr.rel (%p42) target = $region25
    $region24: #{tpu_custom_call.1} parent=1 // pred_region
      %45 = vst [vmem:[#allocation2] sm:$0xff] 0.0
      %46 = vst [vmem:[#allocation2 + $0x8] sm:$0xff] 0.0
    $region25: #{tpu_custom_call.1} parent=1 // pred_fallthru
      _
    %v47 = vld [vmem:[#allocation2] sm:$0xff]
    %v48 = vld [vmem:[#allocation2 + $0x8] sm:$0xff]
    %v49 = vld [vmem:[#allocation3] sm:$0xff]
    %v50 = vld [vmem:[#allocation6] sm:$0xff]
    %v51 = vld [vmem:[#allocation6 + $0x8] sm:$0xff]
    %v52 = vld [vmem:[#allocation6 + $0x10] sm:$0xff]
    %v53 = vld [vmem:[#allocation6 + $0x18] sm:$0xff]
    %v54 = vld [vmem:[#allocation6 + $0x20] sm:$0xff]
    %v55 = vld [vmem:[#allocation6 + $0x28] sm:$0xff]
    %v56 = vld [vmem:[#allocation6 + $0x30] sm:$0xff]
    %v57 = vld [vmem:[#allocation6 + $0x38] sm:$0xff]
    %v58 = vld [vmem:[#allocation6 + $0x40] sm:$0xff]
    %v59 = vld [vmem:[#allocation6 + $0x48] sm:$0xff]
    %v60 = vld [vmem:[#allocation6 + $0x50] sm:$0xff]
    %v61 = vld [vmem:[#allocation6 + $0x58] sm:$0xff]
    %v62 = vld [vmem:[#allocation6 + $0x60] sm:$0xff]
    %v63 = vld [vmem:[#allocation6 + $0x68] sm:$0xff]
    %v64 = vld [vmem:[#allocation6 + $0x70] sm:$0xff]
    %v65 = vld [vmem:[#allocation6 + $0x78] sm:$0xff]
    %v66 = vld [vmem:[#allocation6 + $0x80] sm:$0xff]
    %v67 = vld [vmem:[#allocation6 + $0x88] sm:$0xff]
    %v68 = vld [vmem:[#allocation6 + $0x90] sm:$0xff]
    %v69 = vld [vmem:[#allocation6 + $0x98] sm:$0xff]
    %v70 = vld [vmem:[#allocation6 + $0xa0] sm:$0xff]
    %v71 = vld [vmem:[#allocation6 + $0xa8] sm:$0xff]
    %v72 = vld [vmem:[#allocation6 + $0xb0] sm:$0xff]
    %v73 = vld [vmem:[#allocation6 + $0xb8] sm:$0xff]
    %v74 = vld [vmem:[#allocation6 + $0xc0] sm:$0xff]
    %v75 = vld [vmem:[#allocation6 + $0xc8] sm:$0xff]
    %v76 = vld [vmem:[#allocation6 + $0xd0] sm:$0xff]
    %v77 = vld [vmem:[#allocation6 + $0xd8] sm:$0xff]
    %v78 = vld [vmem:[#allocation6 + $0xe0] sm:$0xff]
    %v79 = vld [vmem:[#allocation6 + $0xe8] sm:$0xff]
    %v80 = vld [vmem:[#allocation6 + $0xf0] sm:$0xff]
    %v81 = vld [vmem:[#allocation6 + $0xf8] sm:$0xff]
    %82 = vmatprep.subr.mxu0 %v51
    %83 = vmatpush1.msra.mxu0 %v50
    %84 = vmatprep.subr.mxu0 %v53
    %85 = vmatpush1.msra.mxu0 %v52
    %86 = vmatprep.subr.mxu0 %v55
    %87 = vmatpush1.msra.mxu0 %v54
    %88 = vmatprep.subr.mxu0 %v57
    %89 = vmatpush1.msra.mxu0 %v56
    %90 = vmatprep.subr.mxu0 %v59
    %91 = vmatpush1.msra.mxu0 %v58
    %92 = vmatprep.subr.mxu0 %v61
    %93 = vmatpush1.msra.mxu0 %v60
    %94 = vmatprep.subr.mxu0 %v63
    %95 = vmatpush1.msra.mxu0 %v62
    %96 = vmatprep.subr.mxu0 %v65
    %97 = vmatpush1.msra.mxu0 %v64
    %98 = vmatprep.subr.mxu0 %v67
    %99 = vmatpush1.msra.mxu0 %v66
    %100 = vmatprep.subr.mxu0 %v69
    %101 = vmatpush1.msra.mxu0 %v68
    %102 = vmatprep.subr.mxu0 %v71
    %103 = vmatpush1.msra.mxu0 %v70
    %104 = vmatprep.subr.mxu0 %v73
    %105 = vmatpush1.msra.mxu0 %v72
    %106 = vmatprep.subr.mxu0 %v75
    %107 = vmatpush1.msra.mxu0 %v74
    %108 = vmatprep.subr.mxu0 %v77
    %109 = vmatpush1.msra.mxu0 %v76
    %110 = vmatprep.subr.mxu0 %v79
    %111 = vmatpush1.msra.mxu0 %v78
    %112 = vmatprep.subr.mxu0 %v81
    %113 = vmatpush1.msra.mxu0 %v80
    %114 = vmatprep.subr.mxu0 0.0
    %115 = vmatpush1.msra.mxu0 0.0
    %116 = vmatprep.subr.mxu0 0.0
    %117 = vmatpush1.msra.mxu0 0.0
    %118 = vmatprep.subr.mxu0 0.0
    %119 = vmatpush1.msra.mxu0 0.0
    %120 = vmatprep.subr.mxu0 0.0
    %121 = vmatpush1.msra.mxu0 0.0
    %122 = vmatprep.subr.mxu0 0.0
    %123 = vmatpush1.msra.mxu0 0.0
    %124 = vmatprep.subr.mxu0 0.0
    %125 = vmatpush1.msra.mxu0 0.0
    %126 = vmatprep.subr.mxu0 0.0
    %127 = vmatpush1.msra.mxu0 0.0
    %128 = vmatprep.subr.mxu0 0.0
    %129 = vmatpush1.msra.mxu0 0.0
    %130 = vmatprep.subr.mxu0 0.0
    %131 = vmatpush1.msra.mxu0 0.0
    %132 = vmatprep.subr.mxu0 0.0
    %133 = vmatpush1.msra.mxu0 0.0
    %134 = vmatprep.subr.mxu0 0.0
    %135 = vmatpush1.msra.mxu0 0.0
    %136 = vmatprep.subr.mxu0 0.0
    %137 = vmatpush1.msra.mxu0 0.0
    %138 = vmatprep.subr.mxu0 0.0
    %139 = vmatpush1.msra.mxu0 0.0
    %140 = vmatprep.subr.mxu0 0.0
    %141 = vmatpush1.msra.mxu0 0.0
    %142 = vmatprep.subr.mxu0 0.0
    %143 = vmatpush1.msra.mxu0 0.0
    %144 = vmatprep.subr.mxu0 0.0
    %145 = vmatpush1.msra.mxu0 0.0
    %146 = vmatprep.mubr.f32.mxu0 0.0
    %147 = vmatmul.mubr.f32.gmra.mrb[0].mxu0 %v49
    %v148 = vpop.f32.mrb[0].mxu0
    %v149 = vadd.f32 0.0, %v148
    %v150 = vpop.f32.mrb[0].mxu0
    %v151 = vadd.f32 0.0, %v150
    %152 = vdwg.mxu0
    %v153 = vadd.f32 %v47, %v149
    %v154 = vadd.f32 %v48, %v151
    %155 = vst [vmem:[#allocation2] sm:$0xff] %v153
    %156 = vst [vmem:[#allocation2 + $0x8] sm:$0xff] %v154
    // Predicated region
    $region26: #{tpu_custom_call.1} parent=1 // pred_check
      %p157 = pneg %p41
    $region27: #{tpu_custom_call.1} parent=1 // pred_check_branch
      %159 = sbr.rel (%p157) target = $region29
    $region28: #{tpu_custom_call.1} parent=1 // pred_region
      %v160 = vld [vmem:[#allocation2] sm:$0xff]
      %v161 = vld [vmem:[#allocation2 + $0x8] sm:$0xff]
      %v162 = vld [vmem:[%s2] sm:$0x3]
      %v164 = vlaneseq
      %v165 = vshrl.u32 %v164, 7
      %v166 = vsub.s32 0, %v165
      %v167 = vrot.slane %v162, %v166
      %v168 = vlaneseq
      %v169 = vshrl.u32 %v168, 7
      %v170 = vsub.s32 1, %v169
      %v171 = vrot.slane %v162, %v170
      %v174 = vadd.f32 %v160, %v167
      %v175 = vadd.f32 %v161, %v171
      %v176 = vxor.u32 %v175, 2147483648
      %v177 = vmul.f32 %v176, 1.442695
      %v178 = vpow.pop %v177
      %v179 = vadd.f32 %v178, 1.0
      %v180 = vrcp.pop %v179
      %v181 = vmul.f32 1.0, %v180
      %v182 = vmul.f32 %v174, %v181
      %183 = vst [vmem:[#allocation8] sm:$0xff] %v182
    $region29: #{tpu_custom_call.1} parent=1 // pred_fallthru
      _
    // Predicated region
    $region30: #{tpu_custom_call.1} parent=1 // pred_check
      _
    $region31: #{tpu_custom_call.1} parent=1 // pred_check_branch
      %185 = sbr.rel (0) target = $region33
    $region32: #{tpu_custom_call.1} parent=1 // pred_region
      %s187 = ssub.s32 128, 128
      %188 = vsyncadd [#allocation5], %s187
      %s190 = sshll.u32 [#allocation8], 4
      %s191 = int_to_ptr.vmem [resolvable:$true] %s190
      %193 = dma.vmem_to_hbm [thread:$0]  %s191, 128, %s3, [#allocation5]
    $region33: #{tpu_custom_call.1} parent=1 // pred_fallthru
      _
    // Predicated region
    $region34: #{tpu_custom_call.1} parent=1 // pred_check
      _
    $region35: #{tpu_custom_call.1} parent=1 // pred_check_branch
      %195 = sbr.rel (0) target = $region37
    $region36: #{tpu_custom_call.1} parent=1 // pred_region
      %196 = dma.done [#allocation5], 128
    $region37: #{tpu_custom_call.1} parent=1 // pred_fallthru
      _
    %197 = vsyncpa [#allocation4], 1
    %198 = vsyncpa [#allocation7], 1
    %199 = vsyncpa [#allocation5], 1

</llo_original>
